<compile_context>
chip_gen: v5e
topology: v5e:2x2
jax: 0.10.0
libtpu: 0.0.40
codegen_flags: <defaults>
</compile_context>

<pallas_src>
import jax
import jax.numpy as jnp
from jax.experimental import pallas as pl
from jax.experimental.pallas import tpu as pltpu


def _round_up(x, m):
    return ((x + m - 1) // m) * m


def _make_rotary_kernel(pos_per_row):
    """Kernel writing one (tile_rows, lane_width) slab of cat(freqs, freqs)."""

    def kernel(offset_ref, invf_ref, laneoff_ref, out_ref):
        # offset_ref:  (1,)             int32  (scalar prefetch, SMEM)
        # invf_ref:    (1, lane_width)  f32    cat(inv_freq, inv_freq) tiled P times
        # laneoff_ref: (1, lane_width)  int32  arange(lane_width) // dim
        # out_ref:     (tile_rows, lane_width) f32
        rows, lanes = out_ref.shape
        base = offset_ref[0] + pl.program_id(0) * (rows * pos_per_row)
        row = jax.lax.broadcasted_iota(jnp.int32, (rows, lanes), 0)
        pos = base + row * pos_per_row
        if pos_per_row > 1:
            # Packed layout: lane l holds position (row*P + l // dim), feature (l % dim).
            # The l // dim lane offset is precomputed on host (one broadcast int add).
            pos = pos + laneoff_ref[...]
        # int32 -> f32 cast before the single multiply matches the reference rounding.
        out_ref[...] = pos.astype(jnp.float32) * invf_ref[...]

    return kernel


def rotary_embedding(max_seq_len, offset=0, ntk_alpha=1.0, *, dim=32,
                     base=10000.0, force_pallas=False):
    """Rotary pos-emb cache slice, shape (1, max_seq_len, 1, dim), float32."""
    assert dim % 2 == 0, "rotary dim must be even"

    # NTK-aware base scaling (identity when ntk_alpha == 1.0): cheap host glue.
    eff_base = base * ntk_alpha ** (dim / (dim - 2))
    inv_freq = 1.0 / eff_base ** (jnp.arange(0, dim, 2, dtype=jnp.float32) / dim)
    invf_full = jnp.concatenate([inv_freq, inv_freq])                 # (dim,)

    # Tiny caches: a Pallas launch is pure overhead; plain XLA fusion is optimal.
    if (max_seq_len * dim) < (64 * 1024) and not force_pallas:
        seq = (offset + jnp.arange(max_seq_len)).astype(jnp.float32)
        emb = seq[:, None] * invf_full[None, :]
        return emb.reshape(1, max_seq_len, 1, dim)

    # Lane packing: P consecutive positions per 128-lane row when dim divides 128;
    # otherwise fall back to dim-wide rows (still a single full-width store).
    if dim < 128 and 128 % dim == 0:
        pos_per_row = 128 // dim
        lane_width = 128
    else:
        pos_per_row = 1
        lane_width = dim
    invf_row = jnp.tile(invf_full, pos_per_row).reshape(1, lane_width)
    laneoff_row = (jnp.arange(lane_width, dtype=jnp.int32) // dim).reshape(1, lane_width)

    rows_total = pl.cdiv(max_seq_len, pos_per_row)
    # Pad the output only to an 8-row multiple; the ragged last grid block is
    # clipped by Pallas, so the wrapper never re-reads the whole cache to slice.
    rows_padded = _round_up(rows_total, 8)

    # ~4 MiB f32 per output tile: amortizes the ~0.35us per-step overhead even
    # against v7x's ~3.2 TB/s writeback, and 2x double-buffered tiles stay far
    # under the explicit 32 MiB scoped-VMEM budget below (safe on v5e..v7x).
    tile_rows = max(8, (4 << 20) // 4 // lane_width)
    tile_rows = min(tile_rows, rows_padded)          # both are multiples of 8
    grid = (pl.cdiv(rows_padded, tile_rows),)

    offset_arr = jnp.asarray([offset], dtype=jnp.int32)

    packed = pl.pallas_call(
        _make_rotary_kernel(pos_per_row),
        out_shape=jax.ShapeDtypeStruct((rows_padded, lane_width), jnp.float32),
        grid_spec=pltpu.PrefetchScalarGridSpec(
            num_scalar_prefetch=1,
            grid=grid,
            in_specs=[
                pl.BlockSpec((1, lane_width), lambda i, off: (0, 0)),
                pl.BlockSpec((1, lane_width), lambda i, off: (0, 0)),
            ],
            out_specs=pl.BlockSpec((tile_rows, lane_width), lambda i, off: (i, 0)),
        ),
        compiler_params=pltpu.CompilerParams(
            dimension_semantics=("parallel",),
            vmem_limit_bytes=32 << 20,
        ),
    )(offset_arr, invf_row, laneoff_row)

    # Packed (rows, 128) row-major is bit-identical to (rows*P, dim) row-major;
    # drop padded tail positions (no-op when already aligned), then 'n d -> 1 n 1 d'.
    emb = packed.reshape(rows_padded * pos_per_row, dim)
    if rows_padded * pos_per_row != max_seq_len:
        emb = emb[:max_seq_len]
    return emb.reshape(1, max_seq_len, 1, dim)


def _reference(max_seq_len, offset, ntk_alpha, dim, base):
    eff_base = base * ntk_alpha ** (dim / (dim - 2))
    inv_freq = 1.0 / eff_base ** (jnp.arange(0, dim, 2, dtype=jnp.float32) / dim)
    seq = (offset + jnp.arange(max_seq_len)).astype(jnp.float32)
    freqs = jnp.outer(seq, inv_freq)
    emb = jnp.concatenate([freqs, freqs], axis=-1)
    return emb.reshape(1, max_seq_len, 1, dim)


if __name__ == "__main__":
    # Inputs are purely analytic; the key only seeds determinism per the harness contract.
    _ = jax.random.PRNGKey(0)

    dim = 32
    base = 10000.0

    # Small shapes consistent with the module (rotary head dim 32, short sequences).
    # force_pallas=True so the Pallas kernel (not the tiny-N jnp fast path) is exercised.
    for (n, off, alpha) in [(8, 0, 1.0), (300, 5, 2.0)]:
        out = rotary_embedding(n, off, alpha, dim=dim, base=base, force_pallas=True)
        out = jax.block_until_ready(out)
        ref = _reference(n, off, alpha, dim, base)
        assert out.shape == (1, n, 1, dim), out.shape
        assert out.dtype == jnp.float32
        assert jnp.allclose(out, ref, atol=1e-6, rtol=1e-6), float(jnp.max(jnp.abs(out - ref)))

    print("KERNEL_OK")
</pallas_src>

<mosaic_0001>
module attributes {stable_mosaic.version = 11 : i64} {
  func.func @kernel(%arg0: i32, %arg1: memref<1xi32, #tpu.memory_space<smem>>, %arg2: memref<1x128xf32, #tpu.memory_space<vmem>>, %arg3: memref<1x128xi32, #tpu.memory_space<vmem>>, %arg4: memref<8x128xf32, #tpu.memory_space<vmem>>) attributes {dimension_semantics = [#tpu.dimension_semantics<parallel>], iteration_bounds = array<i64: 1>, scalar_prefetch = 1 : i64, scratch_operands = 0 : i64, tpu.core_type = #tpu.core_type<tc>, window_params = [{pipeline_mode = #tpu.pipeline_mode<synchronous>, transform_indices = @transform_0, window_bounds = array<i64: 1, 128>}, {pipeline_mode = #tpu.pipeline_mode<synchronous>, transform_indices = @transform_1, window_bounds = array<i64: 1, 128>}, {transform_indices = @transform_2, window_bounds = array<i64: 8, 128>}]} {
    %c0 = arith.constant 0 : index
    %0 = memref.load %arg1[%c0] : memref<1xi32, #tpu.memory_space<smem>>
    %c32_i32 = arith.constant 32 : i32
    %1 = arith.muli %arg0, %c32_i32 : i32
    %2 = arith.addi %0, %1 : i32
    %3 = tpu.iota {dimensions = array<i32: 0>} : vector<8x128xi32>
    %c4_i32 = arith.constant 4 : i32
    %4 = vector.broadcast %c4_i32 : i32 to vector<8x128xi32>
    %5 = arith.muli %3, %4 : vector<8x128xi32>
    %6 = vector.broadcast %2 : i32 to vector<8x128xi32>
    %7 = arith.addi %6, %5 : vector<8x128xi32>
    %c0_0 = arith.constant 0 : index
    %c0_1 = arith.constant 0 : index
    %8 = vector.load %arg3[%c0_0, %c0_1] : memref<1x128xi32, #tpu.memory_space<vmem>>, vector<1x128xi32>
    %9 = vector.broadcast %8 : vector<1x128xi32> to vector<8x128xi32>
    %10 = arith.addi %7, %9 : vector<8x128xi32>
    %11 = arith.sitofp %10 : vector<8x128xi32> to vector<8x128xf32>
    %c0_2 = arith.constant 0 : index
    %c0_3 = arith.constant 0 : index
    %12 = vector.load %arg2[%c0_2, %c0_3] : memref<1x128xf32, #tpu.memory_space<vmem>>, vector<1x128xf32>
    %13 = vector.broadcast %12 : vector<1x128xf32> to vector<8x128xf32>
    %14 = arith.mulf %11, %13 : vector<8x128xf32>
    %c0_4 = arith.constant 0 : index
    %c0_5 = arith.constant 0 : index
    %15 = vector.load %arg4[%c0_4, %c0_5] : memref<8x128xf32, #tpu.memory_space<vmem>>, vector<8x128xf32>
    tpu.vector_store %arg4[%c0_4, %c0_5], %14 {strides = array<i32>} : memref<8x128xf32, #tpu.memory_space<vmem>>, vector<8x128xf32>,
    return
  }
  func.func @transform_0(%arg0: i32, %arg1: memref<1xi32, #tpu.memory_space<smem>>) -> (i32, i32) {
    %c0_i32 = arith.constant 0 : i32
    %c0_i32_0 = arith.constant 0 : i32
    %c0_i32_1 = arith.constant 0 : i32
    return %c0_i32, %c0_i32_0 : i32, i32
  }
  func.func @transform_1(%arg0: i32, %arg1: memref<1xi32, #tpu.memory_space<smem>>) -> (i32, i32) {
    %c0_i32 = arith.constant 0 : i32
    %c0_i32_0 = arith.constant 0 : i32
    %c0_i32_1 = arith.constant 0 : i32
    return %c0_i32, %c0_i32_0 : i32, i32
  }
  func.func @transform_2(%arg0: i32, %arg1: memref<1xi32, #tpu.memory_space<smem>>) -> (i32, i32) {
    %c0_i32 = arith.constant 0 : i32
    %c0_i32_0 = arith.constant 0 : i32
    return %arg0, %c0_i32 : i32, i32
  }
}

</mosaic_0001>

<llo_original>
// kernel: tpu_custom_call.1
$region0: #{tpu_custom_call.1}
  #allocation0 [shape = 'u32[]', space=smem, size = 0x4, offset = 0x4, fixed_abs, tag = 'smem constant byte address 0x4 - core index']
  #allocation1 [shape = 'u32[72,128]{1,0:T(1,128)}', space=vmem, size = 0x9000, scoped, tag = 'internal scratch']
  #allocation2 [shape = 's32[1]{0}', space=sflag, size = 0x4, scoped, tag = 'scoped memory for tpu_custom_call.1']
  #allocation3 [shape = 's32[1]{0:T(128)S(6)}', space=smem, size = 0x200, scoped, tag = 'prefetched SMEM operand 0']
  %s0 = inlined_call_operand.<no memory space> [shape: s32[1], index: 0, kind: input, shape index: {}]
  %s1 = inlined_call_operand.vmem [shape: f32[1,128], index: 1, kind: input, shape index: {}]
  %s2 = inlined_call_operand.vmem [shape: s32[1,128], index: 2, kind: input, shape index: {}]
  %s3 = inlined_call_operand.hbm [shape: f32[8,128], index: 3, kind: output, shape index: {}]
  %s4 = sld [smem:[#allocation0]]
  $region18: #{tpu_custom_call.1} parent=0
    _
  %s6 = ssub.s32 1, %s4
  %s7 = scalar_select 0, %s6, %s4
  %8 = sst [smem:[#allocation3]] %s0
  $region1: #{tpu_custom_call.1} parent=0
    #allocation4 [shape = 'u8[4096]{0}', space=vmem, size = 0x1000, scoped, tag = 'output window, operand 0, single buffered']
    #allocation5 [shape = 's32[1]{0}', space=sflag, size = 0x4, scoped, tag = 'scoped memory for tpu_custom_call.1']
    %9 = vsyncpa [#allocation5], 0
    // Predicated region
    $region2: #{tpu_custom_call.1} parent=1 // pred_check
      _
    $region3: #{tpu_custom_call.1} parent=1 // pred_check_branch
      %11 = sbr.rel (0) target = $region5
    $region4: #{tpu_custom_call.1} parent=1 // pred_region
      _
    $region5: #{tpu_custom_call.1} parent=1 // pred_fallthru
      _
    // Predicated region
    $region6: #{tpu_custom_call.1} parent=1 // pred_check
      _
    $region7: #{tpu_custom_call.1} parent=1 // pred_check_branch
      %13 = sbr.rel (0) target = $region9
    $region8: #{tpu_custom_call.1} parent=1 // pred_region
      _
    $region9: #{tpu_custom_call.1} parent=1 // pred_fallthru
      _
    %s14 = sld [smem:[#allocation3]]
    %s15 = smul.u32 0, 32
    %s16 = sadd.s32 %s14, %s15
    %v17 = vlaneseq
    %v18 = vshrl.u32 %v17, 7
    %v19 = vmul.u32 %v18, 4
    %v20 = vstv %s16
    %v21 = vadd.s32 %v20, %v19
    %v22 = vld [vmem:[%s2] sm:$0x1]
    %v23 = vperm.slane %v22, 0
    %v24 = vadd.s32 %v21, %v23
    %v25 = vcvt.s32.f32 %v24
    %v26 = vld [vmem:[%s1] sm:$0x1]
    %v28 = vperm.slane %v26, 0
    %v30 = vmul.f32 %v25, %v28
    %31 = vst [vmem:[#allocation4] sm:$0xff] %v30
    // Predicated region
    $region10: #{tpu_custom_call.1} parent=1 // pred_check
      _
    $region11: #{tpu_custom_call.1} parent=1 // pred_check_branch
      %33 = sbr.rel (0) target = $region13
    $region12: #{tpu_custom_call.1} parent=1 // pred_region
      %35 = vsyncadd [#allocation5], 0
      %s37 = sshll.u32 [#allocation4], 4
      %s38 = int_to_ptr.vmem [resolvable:$true] %s37
      %s39 = sshll.u32 %s3, 4
      %s40 = int_to_ptr.hbm [resolvable:$true] %s39
      %42 = dma.vmem_to_hbm [thread:$0]  %s38, 128, %s40, [#allocation5]
    $region13: #{tpu_custom_call.1} parent=1 // pred_fallthru
      _
    // Predicated region
    $region14: #{tpu_custom_call.1} parent=1 // pred_check
      _
    $region15: #{tpu_custom_call.1} parent=1 // pred_check_branch
      %44 = sbr.rel (0) target = $region17
    $region16: #{tpu_custom_call.1} parent=1 // pred_region
      %46 = dma.done [#allocation5], 128
    $region17: #{tpu_custom_call.1} parent=1 // pred_fallthru
      _
    %47 = vsyncpa [#allocation5], 1

</llo_original>
